<compile_context>
chip_gen: v7x
topology: tpu7x:2x2x1
jax: 0.10.0
libtpu: 0.0.40
codegen_flags: <defaults>
</compile_context>

<pallas_src>
import math

import jax
import jax.numpy as jnp
from jax.experimental import pallas as pl
from jax.experimental.pallas import tpu as pltpu


def _fusion_kernel(x_ref, w_ref, b_ref, o_ref):
    # x_ref: (TB, F) native dtype (VMEM), w_ref: (F, 1) same dtype (VMEM, resident),
    # b_ref: (1, 1) f32 (SMEM), o_ref: (TB, 1) f32 (VMEM).
    # MXU matvec with f32 accumulation; bias added from SMEM scalar.
    y = jnp.dot(x_ref[...], w_ref[...], preferred_element_type=jnp.float32)
    o_ref[...] = y + b_ref[0, 0]


def _round_up(x, m):
    return ((x + m - 1) // m) * m


def _choose_batch_tile(B, F, itemsize, tb_max):
    """Pick the batch tile TB.

    - VMEM cap: one x tile <= ~8 MiB (16 MiB double-buffered) -> safe on v7x's
      64 MiB VMEM and well under the 40 MiB scoped limit we request.
    - Megacore / pipelining: aim for >= 4 grid steps when the batch is big enough,
      so v7x's two TensorCores both get work and DMAs overlap compute.
    """
    tile_bytes_budget = 8 << 20
    hw_cap = max(8, ((tile_bytes_budget // (F * itemsize)) // 8) * 8)
    cap = hw_cap if tb_max is None else max(8, min(hw_cap, tb_max))
    tb_split = max(8, _round_up(pl.cdiv(B, 4), 8))   # target >= ~4 grid steps
    tb = min(cap, tb_split)
    if tb >= B:
        tb = B                                       # tiny batch: single block
    return tb


def fusion_network_forward(x, extra, weight, bias, *, tb_max=None):
    """Pallas forward of fusion_network: y = Linear(500,1)(Dropout_eval(x)).

    `extra` is unused, matching the PyTorch module's forward (it only feeds x to
    the encoder). Accepts x in its native dtype (f32 or bf16); output is f32.
    """
    del extra  # unused by the reference module
    B, F = x.shape
    assert weight.shape == (1, F)
    itemsize = jnp.dtype(x.dtype).itemsize

    TB = _choose_batch_tile(B, F, itemsize, tb_max)
    grid = (pl.cdiv(B, TB),)

    # Weight as a (F, 1) column at x's dtype so the in-kernel dot needs no cast or
    # transpose; bias as a (1, 1) f32 SMEM scalar.
    w_col = jnp.asarray(weight, x.dtype).reshape(F, 1)
    bias2d = jnp.asarray(bias, jnp.float32).reshape(1, 1)

    out = pl.pallas_call(
        _fusion_kernel,
        out_shape=jax.ShapeDtypeStruct((B, 1), jnp.float32),
        grid_spec=pltpu.PrefetchScalarGridSpec(
            num_scalar_prefetch=0,
            grid=grid,
            in_specs=[
                pl.BlockSpec((TB, F), lambda i: (i, 0)),             # x tile, native dtype
                pl.BlockSpec((F, 1), lambda i: (0, 0)),              # weight column, resident
                pl.BlockSpec(memory_space=pltpu.MemorySpace.SMEM),   # bias scalar in SMEM
            ],
            out_specs=pl.BlockSpec((TB, 1), lambda i: (i, 0)),
        ),
        compiler_params=pltpu.CompilerParams(
            dimension_semantics=("parallel",),   # batch tiles are independent
            vmem_limit_bytes=40 << 20,           # > v5e's 16 MiB default, < v7x's 64 MiB
        ),
        cost_estimate=pl.CostEstimate(
            flops=2 * B * F,
            transcendentals=0,
            bytes_accessed=B * F * itemsize + F * itemsize + B * 4 + 4,
        ),
    )(x, w_col, bias2d)
    return out


def init_params(key):
    """Deterministic parameter init matching nn.Linear(500, 1) + xavier_uniform_."""
    in_features, out_features = 500, 1
    k_w, k_b = jax.random.split(key)
    # xavier_uniform_: U(-a, a), a = sqrt(6 / (fan_in + fan_out))
    a = math.sqrt(6.0 / (in_features + out_features))
    weight = jax.random.uniform(
        k_w, (out_features, in_features), jnp.float32, minval=-a, maxval=a
    )
    # nn.Linear default bias init: U(-1/sqrt(fan_in), 1/sqrt(fan_in))
    bb = 1.0 / math.sqrt(in_features)
    bias = jax.random.uniform(
        k_b, (out_features,), jnp.float32, minval=-bb, maxval=bb
    )
    return weight, bias


if __name__ == "__main__":
    key = jax.random.PRNGKey(0)
    k_params, k_x, k_extra = jax.random.split(key, 3)

    weight, bias = init_params(k_params)

    # Tolerances cover the MXU's default-precision f32 matmul path (bf16 passes);
    # values have magnitude O(1), so 2e-2 is ~4+ sigma of that rounding error.
    TOL = dict(atol=2e-2, rtol=2e-2)

    # --- Test 1: small batch, f32 input, single block (grid=(1,)) ---
    B = 8
    x = jax.random.normal(k_x, (B, 500), jnp.float32)
    extra = jax.random.normal(k_extra, (B, 500), jnp.float32)  # unused, as in the module
    y = jax.block_until_ready(fusion_network_forward(x, extra, weight, bias))
    y_ref = jnp.sum(x * weight, axis=-1, keepdims=True) + bias
    assert y.shape == (B, 1)
    assert jnp.allclose(y, y_ref, **TOL), "f32 single-block mismatch vs reference"

    # --- Test 2: f32 input exercising the megacore-aware split (grid=(4,)) ---
    B3 = 64
    x3 = jax.random.normal(jax.random.PRNGKey(2), (B3, 500), jnp.float32)
    y3 = jax.block_until_ready(fusion_network_forward(x3, None, weight, bias))
    y3_ref = jnp.sum(x3 * weight, axis=-1, keepdims=True) + bias
    assert y3.shape == (B3, 1)
    assert jnp.allclose(y3, y3_ref, **TOL), "f32 multi-block mismatch vs reference"

    # --- Test 3: ragged multi-block grid with native bf16 input (no wrapper cast) ---
    B2 = 40
    x2 = jax.random.normal(jax.random.PRNGKey(1), (B2, 500)).astype(jnp.bfloat16)
    y2 = jax.block_until_ready(
        fusion_network_forward(x2, None, weight, bias, tb_max=16)  # grid=(3,), ragged tail
    )
    y2_ref = jnp.sum(x2.astype(jnp.float32) * weight, axis=-1, keepdims=True) + bias
    assert y2.shape == (B2, 1)
    assert jnp.allclose(y2, y2_ref, atol=3e-2, rtol=3e-2), "bf16 mismatch vs reference"

    print("KERNEL_OK")
</pallas_src>

<mosaic_0001>
module attributes {stable_mosaic.version = 11 : i64} {
  func.func @_fusion_kernel(%arg0: i32, %arg1: memref<8x500xf32, #tpu.memory_space<vmem>>, %arg2: memref<500x1xf32, #tpu.memory_space<vmem>>, %arg3: memref<1x1xf32, #tpu.memory_space<smem>>, %arg4: memref<8x1xf32, #tpu.memory_space<vmem>>) attributes {dimension_semantics = [#tpu.dimension_semantics<parallel>], iteration_bounds = array<i64: 1>, scalar_prefetch = 0 : i64, scratch_operands = 0 : i64, tpu.core_type = #tpu.core_type<tc>, window_params = [{transform_indices = @transform_0, window_bounds = array<i64: 8, 500>}, {pipeline_mode = #tpu.pipeline_mode<synchronous>, transform_indices = @transform_1, window_bounds = array<i64: 500, 1>}, {transform_indices = @transform_2, window_bounds = array<i64: 1, 1>}, {transform_indices = @transform_3, window_bounds = array<i64: 8, 1>}]} {
    %c0 = arith.constant 0 : index
    %c0_0 = arith.constant 0 : index
    %0 = vector.load %arg1[%c0, %c0_0] : memref<8x500xf32, #tpu.memory_space<vmem>>, vector<8x500xf32>
    %c0_1 = arith.constant 0 : index
    %c0_2 = arith.constant 0 : index
    %1 = vector.load %arg2[%c0_1, %c0_2] : memref<500x1xf32, #tpu.memory_space<vmem>>, vector<500x1xf32>
    %cst = arith.constant dense<0.000000e+00> : vector<8x1xf32>
    %2 = tpu.matmul %0, %1, %cst {dimension_numbers = #tpu.dot_dimension_numbers<[1], [0], [0], [1], [0, 0, 1, 1], [], []>} : vector<8x500xf32>, vector<500x1xf32>, vector<8x1xf32> -> vector<8x1xf32>
    %c0_3 = arith.constant 0 : index
    %c0_4 = arith.constant 0 : index
    %3 = memref.load %arg3[%c0_3, %c0_4] : memref<1x1xf32, #tpu.memory_space<smem>>
    %4 = vector.broadcast %3 : f32 to vector<8x1xf32>
    %5 = arith.addf %2, %4 : vector<8x1xf32>
    %c0_5 = arith.constant 0 : index
    %c0_6 = arith.constant 0 : index
    %6 = vector.load %arg4[%c0_5, %c0_6] : memref<8x1xf32, #tpu.memory_space<vmem>>, vector<8x1xf32>
    tpu.vector_store %arg4[%c0_5, %c0_6], %5 {strides = array<i32>} : memref<8x1xf32, #tpu.memory_space<vmem>>, vector<8x1xf32>,
    return
  }
  func.func @transform_0(%arg0: i32) -> (i32, i32) {
    %c0_i32 = arith.constant 0 : i32
    %c0_i32_0 = arith.constant 0 : i32
    return %arg0, %c0_i32 : i32, i32
  }
  func.func @transform_1(%arg0: i32) -> (i32, i32) {
    %c0_i32 = arith.constant 0 : i32
    %c0_i32_0 = arith.constant 0 : i32
    %c0_i32_1 = arith.constant 0 : i32
    return %c0_i32, %c0_i32_0 : i32, i32
  }
  func.func @transform_2(%arg0: i32) -> (i32, i32) {
    %c0_i32 = arith.constant 0 : i32
    %c0_i32_0 = arith.constant 0 : i32
    %c0_i32_1 = arith.constant 0 : i32
    return %c0_i32, %c0_i32_0 : i32, i32
  }
  func.func @transform_3(%arg0: i32) -> (i32, i32) {
    %c0_i32 = arith.constant 0 : i32
    %c0_i32_0 = arith.constant 0 : i32
    return %arg0, %c0_i32 : i32, i32
  }
}

</mosaic_0001>

<llo_original>
// kernel: tpu_custom_call.1
$region0: #{tpu_custom_call.1}
  #allocation0 [shape = 'u32[]', space=smem, size = 0x4, offset = 0x4, fixed_abs, tag = 'smem constant byte address 0x4 - core index']
  #allocation1 [shape = 'u32[144,128]{1,0:T(1,128)}', space=vmem, size = 0x12000, scoped, tag = 'internal scratch']
  #allocation2 [shape = 'f32[1,1]{1,0:T(1,128)S(6)}', space=smem, size = 0x200, scoped, tag = 'scoped memory for tpu_custom_call.1']
  %s0 = inlined_call_operand.vmem [shape: f32[8,500], index: 0, kind: input, shape index: {}]
  %s1 = inlined_call_operand.vmem [shape: f32[500,1], index: 1, kind: input, shape index: {}]
  %s2 = inlined_call_operand.<no memory space> [shape: f32[1,1], index: 2, kind: input, shape index: {}]
  %s3 = inlined_call_operand.vmem [shape: f32[8,1], index: 3, kind: output, shape index: {}]
  %s4 = sld [smem:[#allocation0]]
  $region22: #{tpu_custom_call.1} parent=0
    _
  %s6 = ssub.s32 1, %s4
  %s7 = scalar_select 0, %s6, %s4
  %8 = sst [smem:[#allocation2]] %s2
  // Predicated region
  $region2: #{tpu_custom_call.1} parent=0 // pred_check
    _
  $region3: #{tpu_custom_call.1} parent=0 // pred_check_branch
    %10 = sbr.rel (0) target = $region5
  $region4: #{tpu_custom_call.1} parent=0 // pred_region
    _
  $region5: #{tpu_custom_call.1} parent=0 // pred_fallthru
    _
  // Predicated region
  $region6: #{tpu_custom_call.1} parent=0 // pred_check
    _
  $region7: #{tpu_custom_call.1} parent=0 // pred_check_branch
    %12 = sbr.rel (0) target = $region9
  $region8: #{tpu_custom_call.1} parent=0 // pred_region
    _
  $region9: #{tpu_custom_call.1} parent=0 // pred_fallthru
    _
  // Predicated region
  $region10: #{tpu_custom_call.1} parent=0 // pred_check
    _
  $region11: #{tpu_custom_call.1} parent=0 // pred_check_branch
    %14 = sbr.rel (0) target = $region13
  $region12: #{tpu_custom_call.1} parent=0 // pred_region
    _
  $region13: #{tpu_custom_call.1} parent=0 // pred_fallthru
    _
  %v15 = vld [vmem:[%s0] sm:$0xff]
  %v16 = vld [vmem:[%s0 + $0x8] sm:$0xff]
  %v17 = vld [vmem:[%s0 + $0x10] sm:$0xff]
  %v18 = vld [vmem:[%s0 + $0x18] sm:$0xff]
  %v19 = vld [vmem:[%s1] sm:$0xff]
  %v20 = vld [vmem:[%s1 + $0x8] sm:$0xff]
  %v21 = vld [vmem:[%s1 + $0x10] sm:$0xff]
  %v22 = vld [vmem:[%s1 + $0x18] sm:$0xff]
  %v23 = vld [vmem:[%s1 + $0x20] sm:$0xff]
  %v24 = vld [vmem:[%s1 + $0x28] sm:$0xff]
  %v25 = vld [vmem:[%s1 + $0x30] sm:$0xff]
  %v26 = vld [vmem:[%s1 + $0x38] sm:$0xff]
  %v27 = vld [vmem:[%s1 + $0x40] sm:$0xff]
  %v28 = vld [vmem:[%s1 + $0x48] sm:$0xff]
  %v29 = vld [vmem:[%s1 + $0x50] sm:$0xff]
  %v30 = vld [vmem:[%s1 + $0x58] sm:$0xff]
  %v31 = vld [vmem:[%s1 + $0x60] sm:$0xff]
  %v32 = vld [vmem:[%s1 + $0x68] sm:$0xff]
  %v33 = vld [vmem:[%s1 + $0x70] sm:$0xff]
  %v34 = vld [vmem:[%s1 + $0x78] sm:$0xff]
  %v35 = vld [vmem:[%s1 + $0x80] sm:$0xff]
  %v36 = vld [vmem:[%s1 + $0x88] sm:$0xff]
  %v37 = vld [vmem:[%s1 + $0x90] sm:$0xff]
  %v38 = vld [vmem:[%s1 + $0x98] sm:$0xff]
  %v39 = vld [vmem:[%s1 + $0xa0] sm:$0xff]
  %v40 = vld [vmem:[%s1 + $0xa8] sm:$0xff]
  %v41 = vld [vmem:[%s1 + $0xb0] sm:$0xff]
  %v42 = vld [vmem:[%s1 + $0xb8] sm:$0xff]
  %v43 = vld [vmem:[%s1 + $0xc0] sm:$0xff]
  %v44 = vld [vmem:[%s1 + $0xc8] sm:$0xff]
  %v45 = vld [vmem:[%s1 + $0xd0] sm:$0xff]
  %v46 = vld [vmem:[%s1 + $0xd8] sm:$0xff]
  %v47 = vld [vmem:[%s1 + $0xe0] sm:$0xff]
  %v48 = vld [vmem:[%s1 + $0xe8] sm:$0xff]
  %v49 = vld [vmem:[%s1 + $0xf0] sm:$0xff]
  %v50 = vld [vmem:[%s1 + $0xf8] sm:$0xff]
  %v51 = vld [vmem:[%s1 + $0x100] sm:$0xff]
  %v52 = vld [vmem:[%s1 + $0x108] sm:$0xff]
  %v53 = vld [vmem:[%s1 + $0x110] sm:$0xff]
  %v54 = vld [vmem:[%s1 + $0x118] sm:$0xff]
  %v55 = vld [vmem:[%s1 + $0x120] sm:$0xff]
  %v56 = vld [vmem:[%s1 + $0x128] sm:$0xff]
  %v57 = vld [vmem:[%s1 + $0x130] sm:$0xff]
  %v58 = vld [vmem:[%s1 + $0x138] sm:$0xff]
  %v59 = vld [vmem:[%s1 + $0x140] sm:$0xff]
  %v60 = vld [vmem:[%s1 + $0x148] sm:$0xff]
  %v61 = vld [vmem:[%s1 + $0x150] sm:$0xff]
  %v62 = vld [vmem:[%s1 + $0x158] sm:$0xff]
  %v63 = vld [vmem:[%s1 + $0x160] sm:$0xff]
  %v64 = vld [vmem:[%s1 + $0x168] sm:$0xff]
  %v65 = vld [vmem:[%s1 + $0x170] sm:$0xff]
  %v66 = vld [vmem:[%s1 + $0x178] sm:$0xff]
  %v67 = vld [vmem:[%s1 + $0x180] sm:$0xff]
  %v68 = vld [vmem:[%s1 + $0x188] sm:$0xff]
  %v69 = vld [vmem:[%s1 + $0x190] sm:$0xff]
  %v70 = vld [vmem:[%s1 + $0x198] sm:$0xff]
  %v71 = vld [vmem:[%s1 + $0x1a0] sm:$0xff]
  %v72 = vld [vmem:[%s1 + $0x1a8] sm:$0xff]
  %v73 = vld [vmem:[%s1 + $0x1b0] sm:$0xff]
  %v74 = vld [vmem:[%s1 + $0x1b8] sm:$0xff]
  %v75 = vld [vmem:[%s1 + $0x1c0] sm:$0xff]
  %v76 = vld [vmem:[%s1 + $0x1c8] sm:$0xff]
  %v77 = vld [vmem:[%s1 + $0x1d0] sm:$0xff]
  %v78 = vld [vmem:[%s1 + $0x1d8] sm:$0xff]
  %v79 = vld [vmem:[%s1 + $0x1e0] sm:$0xff]
  %v80 = vld [vmem:[%s1 + $0x1e8] sm:$0xff]
  %v81 = vld [vmem:[%s1 + $0x1f0] sm:$0xf]
  %s82 = sld [smem:[#allocation2]]
  %v83 = vstv %s82
  %vm84 = vcmask 949248
  %v86 = vsel %vm84, %v18, 0
  %vm88 = vcmask 1043456
  %v90 = vsel %vm88, %v81, 0
  %92 = vmatprep.subr.mxu0 0.0
  %93 = vmatpush1.msra.mxu0 %v19
  %94 = vmatprep.subr.mxu0 0.0
  %95 = vmatpush1.msra.mxu0 %v20
  %96 = vmatprep.subr.mxu0 0.0
  %97 = vmatpush1.msra.mxu0 %v21
  %98 = vmatprep.subr.mxu0 0.0
  %99 = vmatpush1.msra.mxu0 %v22
  %100 = vmatprep.subr.mxu0 0.0
  %101 = vmatpush1.msra.mxu0 %v23
  %102 = vmatprep.subr.mxu0 0.0
  %103 = vmatpush1.msra.mxu0 %v24
  %104 = vmatprep.subr.mxu0 0.0
  %105 = vmatpush1.msra.mxu0 %v25
  %106 = vmatprep.subr.mxu0 0.0
  %107 = vmatpush1.msra.mxu0 %v26
  %108 = vmatprep.subr.mxu0 0.0
  %109 = vmatpush1.msra.mxu0 %v27
  %110 = vmatprep.subr.mxu0 0.0
  %111 = vmatpush1.msra.mxu0 %v28
  %112 = vmatprep.subr.mxu0 0.0
  %113 = vmatpush1.msra.mxu0 %v29
  %114 = vmatprep.subr.mxu0 0.0
  %115 = vmatpush1.msra.mxu0 %v30
  %116 = vmatprep.subr.mxu0 0.0
  %117 = vmatpush1.msra.mxu0 %v31
  %118 = vmatprep.subr.mxu0 0.0
  %119 = vmatpush1.msra.mxu0 %v32
  %120 = vmatprep.subr.mxu0 0.0
  %121 = vmatpush1.msra.mxu0 %v33
  %122 = vmatprep.subr.mxu0 0.0
  %123 = vmatpush1.msra.mxu0 %v34
  %124 = vmatprep.subr.mxu0 0.0
  %125 = vmatpush1.msra.mxu0 %v35
  %126 = vmatprep.subr.mxu0 0.0
  %127 = vmatpush1.msra.mxu0 %v36
  %128 = vmatprep.subr.mxu0 0.0
  %129 = vmatpush1.msra.mxu0 %v37
  %130 = vmatprep.subr.mxu0 0.0
  %131 = vmatpush1.msra.mxu0 %v38
  %132 = vmatprep.subr.mxu0 0.0
  %133 = vmatpush1.msra.mxu0 %v39
  %134 = vmatprep.subr.mxu0 0.0
  %135 = vmatpush1.msra.mxu0 %v40
  %136 = vmatprep.subr.mxu0 0.0
  %137 = vmatpush1.msra.mxu0 %v41
  %138 = vmatprep.subr.mxu0 0.0
  %139 = vmatpush1.msra.mxu0 %v42
  %140 = vmatprep.subr.mxu0 0.0
  %141 = vmatpush1.msra.mxu0 %v43
  %142 = vmatprep.subr.mxu0 0.0
  %143 = vmatpush1.msra.mxu0 %v44
  %144 = vmatprep.subr.mxu0 0.0
  %145 = vmatpush1.msra.mxu0 %v45
  %146 = vmatprep.subr.mxu0 0.0
  %147 = vmatpush1.msra.mxu0 %v46
  %148 = vmatprep.subr.mxu0 0.0
  %149 = vmatpush1.msra.mxu0 %v47
  %150 = vmatprep.subr.mxu0 0.0
  %151 = vmatpush1.msra.mxu0 %v48
  %152 = vmatprep.subr.mxu0 0.0
  %153 = vmatpush1.msra.mxu0 %v49
  %154 = vmatprep.subr.mxu0 0.0
  %155 = vmatpush1.msra.mxu0 %v50
  %156 = vmatprep.mubr.f32.mxu0 %v16
  %157 = vmatmul.mubr.f32.gmra.mrb[0].mxu0 %v15
  %v158 = vpop.f32.mrb[0].mxu0
  %v159 = vadd.f32 %v83, %v158
  %v160 = vpop.f32.mrb[0].mxu0
  %161 = vdwg.mxu0
  %162 = vmatprep.subr.mxu0 0.0
  %163 = vmatpush1.msra.mxu0 %v51
  %164 = vmatprep.subr.mxu0 0.0
  %165 = vmatpush1.msra.mxu0 %v52
  %166 = vmatprep.subr.mxu0 0.0
  %167 = vmatpush1.msra.mxu0 %v53
  %168 = vmatprep.subr.mxu0 0.0
  %169 = vmatpush1.msra.mxu0 %v54
  %170 = vmatprep.subr.mxu0 0.0
  %171 = vmatpush1.msra.mxu0 %v55
  %172 = vmatprep.subr.mxu0 0.0
  %173 = vmatpush1.msra.mxu0 %v56
  %174 = vmatprep.subr.mxu0 0.0
  %175 = vmatpush1.msra.mxu0 %v57
  %176 = vmatprep.subr.mxu0 0.0
  %177 = vmatpush1.msra.mxu0 %v58
  %178 = vmatprep.subr.mxu0 0.0
  %179 = vmatpush1.msra.mxu0 %v59
  %180 = vmatprep.subr.mxu0 0.0
  %181 = vmatpush1.msra.mxu0 %v60
  %182 = vmatprep.subr.mxu0 0.0
  %183 = vmatpush1.msra.mxu0 %v61
  %184 = vmatprep.subr.mxu0 0.0
  %185 = vmatpush1.msra.mxu0 %v62
  %186 = vmatprep.subr.mxu0 0.0
  %187 = vmatpush1.msra.mxu0 %v63
  %188 = vmatprep.subr.mxu0 0.0
  %189 = vmatpush1.msra.mxu0 %v64
  %190 = vmatprep.subr.mxu0 0.0
  %191 = vmatpush1.msra.mxu0 %v65
  %192 = vmatprep.subr.mxu0 0.0
  %193 = vmatpush1.msra.mxu0 %v66
  %194 = vmatprep.subr.mxu0 0.0
  %195 = vmatpush1.msra.mxu0 %v67
  %196 = vmatprep.subr.mxu0 0.0
  %197 = vmatpush1.msra.mxu0 %v68
  %198 = vmatprep.subr.mxu0 0.0
  %199 = vmatpush1.msra.mxu0 %v69
  %200 = vmatprep.subr.mxu0 0.0
  %201 = vmatpush1.msra.mxu0 %v70
  %202 = vmatprep.subr.mxu0 0.0
  %203 = vmatpush1.msra.mxu0 %v71
  %204 = vmatprep.subr.mxu0 0.0
  %205 = vmatpush1.msra.mxu0 %v72
  %206 = vmatprep.subr.mxu0 0.0
  %207 = vmatpush1.msra.mxu0 %v73
  %208 = vmatprep.subr.mxu0 0.0
  %209 = vmatpush1.msra.mxu0 %v74
  %210 = vmatprep.subr.mxu0 0.0
  %211 = vmatpush1.msra.mxu0 %v75
  %212 = vmatprep.subr.mxu0 0.0
  %213 = vmatpush1.msra.mxu0 %v76
  %214 = vmatprep.subr.mxu0 0.0
  %215 = vmatpush1.msra.mxu0 %v77
  %216 = vmatprep.subr.mxu0 0.0
  %217 = vmatpush1.msra.mxu0 %v78
  %218 = vmatprep.subr.mxu0 0.0
  %219 = vmatpush1.msra.mxu0 %v79
  %220 = vmatprep.subr.mxu0 0.0
  %221 = vmatpush1.msra.mxu0 %v80
  %222 = vmatprep.subr.mxu0 0.0
  %223 = vmatpush1.msra.mxu0 %v90
  %224 = vmatprep.subr.mxu0 0.0
  %225 = vmatpush1.msra.mxu0 0.0
  %226 = vmatprep.mubr.f32.mxu0 %v86
  %227 = vmatmul.mubr.f32.gmra.mrb[0].mxu0 %v17
  %v228 = vpop.f32.mrb[0].mxu0
  %v229 = vadd.f32 %v159, %v228
  %v230 = vpop.f32.mrb[0].mxu0
  %231 = vdwg.mxu0
  %vm232 = vcmask 7168
  %233 = vst.msk [vmem:[%s3] sm:$0xff] %vm232, %v229
  // Predicated region
  $region14: #{tpu_custom_call.1} parent=0 // pred_check
    _
  $region15: #{tpu_custom_call.1} parent=0 // pred_check_branch
    %235 = sbr.rel (0) target = $region17
  $region16: #{tpu_custom_call.1} parent=0 // pred_region
    _
  $region17: #{tpu_custom_call.1} parent=0 // pred_fallthru
    _
  // Predicated region
  $region18: #{tpu_custom_call.1} parent=0 // pred_check
    _
  $region19: #{tpu_custom_call.1} parent=0 // pred_check_branch
    %237 = sbr.rel (0) target = $region21
  $region20: #{tpu_custom_call.1} parent=0 // pred_region
    _
  $region21: #{tpu_custom_call.1} parent=0 // pred_fallthru
    _

</llo_original>
